<compile_context>
chip_gen: v5e
topology: v5e:2x2
jax: 0.10.0
libtpu: 0.0.40
codegen_flags: <defaults>
</compile_context>

<pallas_src>
import math

import jax
import jax.numpy as jnp
from jax.experimental import pallas as pl
from jax.experimental.pallas import tpu as pltpu

# Stand-ins for BytePairEncoding token indices.
PAD_TOKEN_IDX = 0
SEP_TOKEN_IDX = 1
MAX_SEG_ID = 3          # nn.Embedding(max_seg_id, hidden_dim)


def _seg_pad_kernel(meta_ref, x_ref, seg_emb_ref, o_ref):
    """One (R, H) row tile:  o = is_pad ? 0 : x + seg_emb[seg_id].

    meta_ref    : (R, 1) int8  per-row code: 0..K-1 -> segment id, K -> <PAD>
    x_ref       : (R, H)       token embedding + positional encoding rows
    seg_emb_ref : (K, H)       segmentation embedding table (tiny, resident)
    o_ref       : (R, H)
    """
    K = seg_emb_ref.shape[0]
    meta = meta_ref[...].astype(jnp.int32)                  # (R, 1)

    # Fused select-"gather" over the K (=3) table rows: start from row K-1
    # (clamping semantics for out-of-range ids, same as a jnp gather) and
    # override downwards.  2-D slices keep the table loads lane-dense.
    e = seg_emb_ref[K - 1:K, :]                             # (1, H)
    for k in range(K - 2, -1, -1):                          # static unroll
        e = jnp.where(meta == k, seg_emb_ref[k:k + 1, :], e)

    out = jnp.where(meta < K, x_ref[...] + e, 0.0)          # <PAD> rows -> 0
    o_ref[...] = out.astype(o_ref.dtype)                    # bf16-safe store


def _pick_block_rows(n_rows, row_bytes, target_tile_bytes):
    """Largest multiple-of-32 divisor of n_rows whose x-tile fits the target.

    Prefers >= 2 grid steps (v7x has two TensorCores) and an even step count
    (load balance); returns None if no suitable divisor exists.
    """
    max_rows = max(32, target_tile_bytes // max(row_bytes, 1))
    cands = [r for r in range(32, min(n_rows, max_rows) + 1, 32)
             if n_rows % r == 0]
    if not cands:
        return None
    multi = [r for r in cands if n_rows // r >= 2]
    even = [r for r in multi if (n_rows // r) % 2 == 0]
    for pool in (even, multi, cands):
        if pool:
            return max(pool)
    return None


def base_model_embed(tokens, tok_emb, pe, seg_emb, *, target_tile_bytes=6 << 20):
    """Embedding stage of BaseModel.forward (eval mode).

    tokens : (S, B) int32 token ids
    tok_emb: (V, H) token embedding table (row PAD is zero: padding_idx)
    pe     : (max_len, H) sinusoidal positional table, max_len >= S
    seg_emb: (K, H) segmentation embedding table
    returns: (S, B, H)
    """
    S, B = tokens.shape
    V, H = tok_emb.shape
    K, He = seg_emb.shape
    assert He == H and pe.shape[1] == H and pe.shape[0] >= S
    n = S * B

    # --- tiny (S, B) integer preprocessing (kept in XLA: sequential cumsum) --
    is_pad = tokens == PAD_TOKEN_IDX
    is_sep = (tokens == SEP_TOKEN_IDX).astype(jnp.int32)
    seg_ids = jnp.cumsum(is_sep, axis=0) - is_sep                    # (S, B)

    # Per-row metadata packed into ONE int8: 0..K-1 = segment id, K = <PAD>.
    meta = jnp.where(is_pad, K, jnp.minimum(seg_ids, K - 1))
    meta_flat = meta.reshape(n, 1).astype(jnp.int8)                  # (n, 1)

    # --- token embedding + positional encoding, flattened to (n, H) rows ----
    # Both gathers + the add fuse into one XLA pass that writes x_flat once;
    # the Pallas kernel then reads it once and overwrites it in place.
    # TODO(synk): fold this gather into the kernel to make the whole stage a
    # single write-only pass over the activation.
    tok_flat = tokens.reshape(n)
    pos_flat = jnp.repeat(jnp.arange(S, dtype=jnp.int32), B)         # row -> s
    x_flat = tok_emb[tok_flat] + pe[pos_flat]                        # (n, H)

    # --- tiling: exact divisor of n (no pad / slice copies) -----------------
    row_bytes = H * x_flat.dtype.itemsize
    block_rows = _pick_block_rows(n, row_bytes, target_tile_bytes)
    if block_rows is None:
        # Single full block (still no padding); only valid while the whole
        # activation fits comfortably in VMEM.
        if n * row_bytes > (16 << 20):
            raise ValueError(
                f"S*B={n} has no multiple-of-32 divisor with a tile <= "
                f"{target_tile_bytes} bytes; pad batch/sequence upstream.")
        block_rows = n
    grid = (n // block_rows,)

    # Explicit scoped-VMEM budget: double-buffered in/out x tiles + the small
    # metadata tiles + the (sublane-padded) segment table + headroom.  Raises
    # v5e's 16 MiB default when large tiles are used; stays well under v7x's
    # 64 MiB-per-TensorCore physical VMEM.
    x_tile = block_rows * row_bytes
    meta_tile = block_rows * 128                # int8 (R,1) tile, lane-padded
    seg_tile = 8 * H * 4                        # (K,H) padded to 8 sublanes
    vmem_limit = 4 * x_tile + 2 * meta_tile + 2 * seg_tile + (4 << 20)
    vmem_limit = int(min(max(vmem_limit, 16 << 20), 48 << 20))

    out_flat = pl.pallas_call(
        _seg_pad_kernel,
        out_shape=jax.ShapeDtypeStruct((n, H), x_flat.dtype),
        grid=grid,
        in_specs=[
            pl.BlockSpec((block_rows, 1), lambda i: (i, 0)),   # meta (int8)
            pl.BlockSpec((block_rows, H), lambda i: (i, 0)),   # x rows
            pl.BlockSpec((K, H), lambda i: (0, 0)),            # seg table
        ],
        out_specs=pl.BlockSpec((block_rows, H), lambda i: (i, 0)),
        # x_flat is a consumed jit intermediate, so the alias is honored
        # without a defensive copy: the kernel overwrites x in place.
        input_output_aliases={1: 0},
        compiler_params=pltpu.CompilerParams(
            dimension_semantics=("parallel",),          # v7x megacore split
            vmem_limit_bytes=vmem_limit),
    )(meta_flat, x_flat, seg_emb)

    # Lane-dense (S*B, H) is what a kernelized encoder stack would consume
    # directly; reshape back to the module's (S, B, H) for the caller.
    return out_flat.reshape(S, B, H)


def _reference(tokens, tok_emb, pe, seg_emb):
    """Pure-JAX mirror of the PyTorch embedding stage (eval mode)."""
    S = tokens.shape[0]
    is_pad = tokens == PAD_TOKEN_IDX
    is_sep = (tokens == SEP_TOKEN_IDX).astype(jnp.int32)
    seg_ids = jnp.cumsum(is_sep, axis=0) - is_sep
    out = tok_emb[tokens] + pe[:S][:, None, :] + seg_emb[seg_ids]
    return jnp.where(is_pad[..., None], 0.0, out)


if __name__ == "__main__":
    S, B, H = 64, 2, 256            # hidden_dim=256 is the module default
    V, K, MAX_LEN = 50, MAX_SEG_ID, 128

    key = jax.random.PRNGKey(0)
    k_tok, k_emb, k_seg = jax.random.split(key, 3)

    # Token table with padding_idx=PAD row zeroed (as nn.Embedding does).
    tok_emb = 0.02 * jax.random.normal(k_emb, (V, H), dtype=jnp.float32)
    tok_emb = tok_emb.at[PAD_TOKEN_IDX].set(0.0)
    seg_emb = 0.02 * jax.random.normal(k_seg, (K, H), dtype=jnp.float32)

    # Sinusoidal positional table, exactly as PositionalEncoding builds it.
    pos = jnp.arange(MAX_LEN, dtype=jnp.float32)[:, None]
    div = jnp.exp(jnp.arange(0, H, 2, dtype=jnp.float32)
                  * (-math.log(10000.0) / H))
    pe = jnp.zeros((MAX_LEN, H), jnp.float32)
    pe = pe.at[:, 0::2].set(jnp.sin(pos * div))
    pe = pe.at[:, 1::2].set(jnp.cos(pos * div))

    # Tokens in [2, V); two SEP rows (seg ids stay in [0, K)); padded tails.
    tokens = jax.random.randint(k_tok, (S, B), 2, V, dtype=jnp.int32)
    tokens = tokens.at[20, :].set(SEP_TOKEN_IDX)
    tokens = tokens.at[40, :].set(SEP_TOKEN_IDX)
    tokens = tokens.at[S - 5:, 0].set(PAD_TOKEN_IDX)
    tokens = tokens.at[S - 3:, 1].set(PAD_TOKEN_IDX)

    ref = _reference(tokens, tok_emb, pe, seg_emb)

    fn = jax.jit(base_model_embed)
    out = jax.block_until_ready(fn(tokens, tok_emb, pe, seg_emb))

    assert out.shape == (S, B, H) and out.dtype == jnp.float32
    assert jnp.allclose(out, ref, atol=1e-6, rtol=1e-6), "mismatch vs reference"

    print("KERNEL_OK")
</pallas_src>

<mosaic_0001>
module attributes {stable_mosaic.version = 11 : i64} {
  func.func @_seg_pad_kernel(%arg0: i32, %arg1: memref<64x1xi8, #tpu.memory_space<vmem>>, %arg2: memref<64x256xf32, #tpu.memory_space<vmem>>, %arg3: memref<3x256xf32, #tpu.memory_space<vmem>>, %arg4: memref<64x256xf32, #tpu.memory_space<vmem>>) attributes {dimension_semantics = [#tpu.dimension_semantics<parallel>], iteration_bounds = array<i64: 2>, scalar_prefetch = 0 : i64, scratch_operands = 0 : i64, tpu.core_type = #tpu.core_type<tc>, window_params = [{transform_indices = @transform_0, window_bounds = array<i64: 64, 1>}, {transform_indices = @transform_1, window_bounds = array<i64: 64, 256>}, {pipeline_mode = #tpu.pipeline_mode<synchronous>, transform_indices = @transform_2, window_bounds = array<i64: 3, 256>}, {transform_indices = @transform_3, window_bounds = array<i64: 64, 256>}]} {
    %c0 = arith.constant 0 : index
    %c0_0 = arith.constant 0 : index
    %0 = vector.load %arg1[%c0, %c0_0] : memref<64x1xi8, #tpu.memory_space<vmem>>, vector<64x1xi8>
    %1 = arith.extsi %0 : vector<64x1xi8> to vector<64x1xi32>
    %c2 = arith.constant 2 : index
    %c0_1 = arith.constant 0 : index
    %2 = vector.load %arg3[%c2, %c0_1] : memref<3x256xf32, #tpu.memory_space<vmem>>, vector<1x256xf32>
    %c1_i32 = arith.constant 1 : i32
    %3 = vector.broadcast %c1_i32 : i32 to vector<64x1xi32>
    %4 = arith.cmpi eq, %1, %3 : vector<64x1xi32>
    %c1 = arith.constant 1 : index
    %c0_2 = arith.constant 0 : index
    %5 = vector.load %arg3[%c1, %c0_2] : memref<3x256xf32, #tpu.memory_space<vmem>>, vector<1x256xf32>
    %6 = vector.shape_cast %4 : vector<64x1xi1> to vector<64x1xi1>
    %7 = vector.broadcast %6 : vector<64x1xi1> to vector<64x256xi1>
    %8 = vector.shape_cast %5 : vector<1x256xf32> to vector<1x256xf32>
    %9 = vector.broadcast %8 : vector<1x256xf32> to vector<64x256xf32>
    %10 = vector.shape_cast %2 : vector<1x256xf32> to vector<1x256xf32>
    %11 = vector.broadcast %10 : vector<1x256xf32> to vector<64x256xf32>
    %12 = arith.select %7, %9, %11 : vector<64x256xi1>, vector<64x256xf32>
    %c0_i32 = arith.constant 0 : i32
    %13 = vector.broadcast %c0_i32 : i32 to vector<64x1xi32>
    %14 = arith.cmpi eq, %1, %13 : vector<64x1xi32>
    %c0_3 = arith.constant 0 : index
    %c0_4 = arith.constant 0 : index
    %15 = vector.load %arg3[%c0_3, %c0_4] : memref<3x256xf32, #tpu.memory_space<vmem>>, vector<1x256xf32>
    %16 = vector.shape_cast %14 : vector<64x1xi1> to vector<64x1xi1>
    %17 = vector.broadcast %16 : vector<64x1xi1> to vector<64x256xi1>
    %18 = vector.shape_cast %15 : vector<1x256xf32> to vector<1x256xf32>
    %19 = vector.broadcast %18 : vector<1x256xf32> to vector<64x256xf32>
    %20 = arith.select %17, %19, %12 : vector<64x256xi1>, vector<64x256xf32>
    %c3_i32 = arith.constant 3 : i32
    %21 = vector.broadcast %c3_i32 : i32 to vector<64x1xi32>
    %22 = arith.cmpi slt, %1, %21 : vector<64x1xi32>
    %c0_5 = arith.constant 0 : index
    %c0_6 = arith.constant 0 : index
    %23 = vector.load %arg2[%c0_5, %c0_6] : memref<64x256xf32, #tpu.memory_space<vmem>>, vector<64x256xf32>
    %24 = arith.addf %23, %20 : vector<64x256xf32>
    %cst = arith.constant 0.000000e+00 : f32
    %25 = vector.shape_cast %22 : vector<64x1xi1> to vector<64x1xi1>
    %26 = vector.broadcast %25 : vector<64x1xi1> to vector<64x256xi1>
    %27 = vector.broadcast %cst : f32 to vector<64x256xf32>
    %28 = arith.select %26, %24, %27 : vector<64x256xi1>, vector<64x256xf32>
    %c0_7 = arith.constant 0 : index
    %c0_8 = arith.constant 0 : index
    %29 = vector.load %arg4[%c0_7, %c0_8] : memref<64x256xf32, #tpu.memory_space<vmem>>, vector<64x256xf32>
    tpu.vector_store %arg4[%c0_7, %c0_8], %28 {strides = array<i32>} : memref<64x256xf32, #tpu.memory_space<vmem>>, vector<64x256xf32>,
    return
  }
  func.func @transform_0(%arg0: i32) -> (i32, i32) {
    %c0_i32 = arith.constant 0 : i32
    %c0_i32_0 = arith.constant 0 : i32
    return %arg0, %c0_i32 : i32, i32
  }
  func.func @transform_1(%arg0: i32) -> (i32, i32) {
    %c0_i32 = arith.constant 0 : i32
    %c0_i32_0 = arith.constant 0 : i32
    return %arg0, %c0_i32 : i32, i32
  }
  func.func @transform_2(%arg0: i32) -> (i32, i32) {
    %c0_i32 = arith.constant 0 : i32
    %c0_i32_0 = arith.constant 0 : i32
    %c0_i32_1 = arith.constant 0 : i32
    return %c0_i32, %c0_i32_0 : i32, i32
  }
  func.func @transform_3(%arg0: i32) -> (i32, i32) {
    %c0_i32 = arith.constant 0 : i32
    %c0_i32_0 = arith.constant 0 : i32
    return %arg0, %c0_i32 : i32, i32
  }
}

</mosaic_0001>

<llo_original>
// kernel: base_model_embed.1
$region0: #{base_model_embed.1}
  #allocation0 [shape = 'u32[]', space=smem, size = 0x4, offset = 0x4, fixed_abs, tag = 'smem constant byte address 0x4 - core index']
  #allocation1 [shape = 'u32[72,128]{1,0:T(1,128)}', space=vmem, size = 0x9000, scoped, tag = 'internal scratch']
  %s0 = inlined_call_operand.vmem [shape: s8[128,1], index: 0, kind: input, shape index: {}]
  %s1 = inlined_call_operand.vmem [shape: f32[128,256], index: 1, kind: input, shape index: {}, may-alias: {1,3}]
  %s2 = inlined_call_operand.vmem [shape: f32[3,256], index: 2, kind: input, shape index: {}]
  %s3 = inlined_call_operand.vmem [shape: f32[128,256], index: 3, kind: output, shape index: {}, may-alias: {1,3}]
  %s4 = sld [smem:[#allocation0]]
  $region45: #{base_model_embed.1} parent=0
    _
  %s6 = ssub.s32 1, %s4
  %s7 = scalar_select 0, %s6, %s4
  loop: start=0, step=1, limit=4
  $region2: #{base_model_embed.1} parent=0 // loop_pre_header
    _
  $region3: #{base_model_embed.1} parent=0 // loop_header
    %s9 = sphi 0, %s13
    %p10 = scmp.ge.s32.totalorder %s9, 4
    %s19 = sphi 0, %s21
    %s22 = sphi 0, %s19
    %s23 = sphi 0, %s22
    %s39 = sphi 0, %s23
    %s45 = sphi 0, %s47
    %s48 = sphi 0, %s45
    %s49 = sphi 0, %s48
    %s65 = sphi 0, %s49
    %s69 = sphi 0, %s69
    %s71 = sphi 0, %s69
    %s72 = sphi 0, %s71
    %s86 = sphi 0, %s72
    %s92 = sphi 0, %s94
    %s95 = sphi 0, %s92
    %s96 = sphi 0, %s95
    %s112 = sphi 0, %s96
  $region4: #{base_model_embed.1} parent=0 // loop_header_branch
    %12 = sbr.rel (%p10) target = $region8
  $region5: #{base_model_embed.1} parent=0 // loop_body
    %s14 = ssub.s32 %s9, 1
    %s15 = ssub.s32 %s9, 2
    %s16 = sadd.s32 %s9, 1
    %s17 = ssub.s32 %s9, %s16
    %p18 = scmp.eq.s32.totalorder %s17, 0
    %s20 = sadd.s32 %s19, 1
    %s21 = scalar_select %p18, %s19, %s20
    %p24 = pneg %p18
    %p25 = scmp.eq.s32.totalorder %s9, 1
    %p26 = por %p24, %p25
    %p27 = scmp.ne.s32.totalorder %s19, %s22
    %p28 = scmp.eq.s32.totalorder %s9, 0
    %p29 = por %p27, %p28
    %p30 = scmp.ne.s32.totalorder %s19, %s22
    %p31 = scmp.eq.s32.totalorder %s14, 1
    %p32 = por %p30, %p31
    %p33 = scmp.ne.s32.totalorder %s22, %s23
    %p34 = scmp.eq.s32.totalorder %s14, 0
    %p35 = por %p33, %p34
    %p36 = scmp.ne.s32.totalorder %s22, %s23
    %p37 = scmp.eq.s32.totalorder %s15, 1
    %p38 = por %p36, %p37
    %p40 = scmp.ne.s32.totalorder %s23, %s39
    %p41 = scmp.eq.s32.totalorder %s15, 0
    %p42 = por %p40, %p41
    %s43 = ssub.s32 %s9, %s16
    %p44 = scmp.eq.s32.totalorder %s43, 0
    %s46 = sadd.s32 %s45, 1
    %s47 = scalar_select %p44, %s45, %s46
    %p50 = pneg %p44
    %p51 = scmp.eq.s32.totalorder %s9, 1
    %p52 = por %p50, %p51
    %p53 = scmp.ne.s32.totalorder %s45, %s48
    %p54 = scmp.eq.s32.totalorder %s9, 0
    %p55 = por %p53, %p54
    %p56 = scmp.ne.s32.totalorder %s45, %s48
    %p57 = scmp.eq.s32.totalorder %s14, 1
    %p58 = por %p56, %p57
    %p59 = scmp.ne.s32.totalorder %s48, %s49
    %p60 = scmp.eq.s32.totalorder %s14, 0
    %p61 = por %p59, %p60
    %p62 = scmp.ne.s32.totalorder %s48, %s49
    %p63 = scmp.eq.s32.totalorder %s15, 1
    %p64 = por %p62, %p63
    %p66 = scmp.ne.s32.totalorder %s49, %s65
    %p67 = scmp.eq.s32.totalorder %s15, 0
    %p68 = por %p66, %p67
    %s70 = sadd.s32 %s69, 1
    %p73 = scmp.eq.s32.totalorder %s9, 1
    %p74 = scmp.ne.s32.totalorder %s69, %s71
    %p75 = scmp.eq.s32.totalorder %s9, 0
    %p76 = por %p74, %p75
    %p77 = scmp.ne.s32.totalorder %s69, %s71
    %p78 = scmp.eq.s32.totalorder %s14, 1
    %p79 = por %p77, %p78
    %p80 = scmp.ne.s32.totalorder %s71, %s72
    %p81 = scmp.eq.s32.totalorder %s14, 0
    %p82 = por %p80, %p81
    %p83 = scmp.ne.s32.totalorder %s71, %s72
    %p84 = scmp.eq.s32.totalorder %s15, 1
    %p85 = por %p83, %p84
    %p87 = scmp.ne.s32.totalorder %s72, %s86
    %p88 = scmp.eq.s32.totalorder %s15, 0
    %p89 = por %p87, %p88
    %s90 = ssub.s32 %s9, %s16
    %p91 = scmp.eq.s32.totalorder %s90, 0
    %s93 = sadd.s32 %s92, 1
    %s94 = scalar_select %p91, %s92, %s93
    %p97 = pneg %p91
    %p98 = scmp.eq.s32.totalorder %s9, 1
    %p99 = por %p97, %p98
    %p100 = scmp.ne.s32.totalorder %s92, %s95
    %p101 = scmp.eq.s32.totalorder %s9, 0
    %p102 = por %p100, %p101
    %p103 = scmp.ne.s32.totalorder %s92, %s95
    %p104 = scmp.eq.s32.totalorder %s14, 1
    %p105 = por %p103, %p104
    %p106 = scmp.ne.s32.totalorder %s95, %s96
    %p107 = scmp.eq.s32.totalorder %s14, 0
    %p108 = por %p106, %p107
    %p109 = scmp.ne.s32.totalorder %s95, %s96
    %p110 = scmp.eq.s32.totalorder %s15, 1
    %p111 = por %p109, %p110
    %p113 = scmp.ne.s32.totalorder %s96, %s112
    %p114 = scmp.eq.s32.totalorder %s15, 0
    %p115 = por %p113, %p114
    %p116 = scmp.le.s32.totalorder 1, %s9
    %p117 = scmp.lt.s32.totalorder %s9, 3
    %p118 = pnand %p116, %p117
    %p119 = pneg %p118
    // Predicated region
    $region9: #{base_model_embed.1} parent=5 // pred_check
      _
    $region10: #{base_model_embed.1} parent=5 // pred_check_branch
      %121 = sbr.rel (%p118) target = $region12
    $region11: #{base_model_embed.1} parent=5 // pred_region
      %s122 = ssub.s32 %s9, 1
      // Predicated region
      $region13: #{base_model_embed.1} parent=11 // pred_check
        %p123 = pneg %p82
      $region14: #{base_model_embed.1} parent=11 // pred_check_branch
        %125 = sbr.rel (%p123) target = $region16
      $region15: #{base_model_embed.1} parent=11 // pred_region
        _
      $region16: #{base_model_embed.1} parent=11 // pred_fallthru
        _
    $region12: #{base_model_embed.1} parent=5 // pred_fallthru
      _
    %p126 = scmp.lt.s32.totalorder %s9, 2
    // Predicated region
    $region17: #{base_model_embed.1} parent=5 // pred_check
      %p127 = pneg %p126
    $region18: #{base_model_embed.1} parent=5 // pred_check_branch
      %129 = sbr.rel (%p127) target = $region20
    $region19: #{base_model_embed.1} parent=5 // pred_region
      // Predicated region
      $region21: #{base_model_embed.1} parent=19 // pred_check
        %p130 = pneg %p29
      $region22: #{base_model_embed.1} parent=19 // pred_check_branch
        %132 = sbr.rel (%p130) target = $region24
      $region23: #{base_model_embed.1} parent=19 // pred_region
        %s133 = smul.u32 2, %s9
        %p134 = scmp.lt.s32.totalorder %s133, 3
        %s135 = scalar_select %p134, %s133, 3
        %s136 = smul.addr %s135, 8
        %s137 = scalar_lea.vmem %s0, %s136
        %s138 = smul.u32 2, %s9
      $region24: #{base_model_embed.1} parent=19 // pred_fallthru
        _
      // Predicated region
      $region25: #{base_model_embed.1} parent=19 // pred_check
        %p139 = pneg %p55
      $region26: #{base_model_embed.1} parent=19 // pred_check_branch
        %141 = sbr.rel (%p139) target = $region28
      $region27: #{base_model_embed.1} parent=19 // pred_region
        %s142 = smul.u32 8, %s9
        %p143 = scmp.lt.s32.totalorder %s142, 15
        %s144 = scalar_select %p143, %s142, 15
        %s145 = smul.addr %s144, 2
        %s146 = smul.addr %s145, 8
        %s147 = scalar_lea.vmem %s1, %s146
        %s148 = smul.u32 8, %s9
      $region28: #{base_model_embed.1} parent=19 // pred_fallthru
        _
    $region20: #{base_model_embed.1} parent=5 // pred_fallthru
      _
    %p149 = scmp.le.s32.totalorder 1, %s9
    %p150 = scmp.lt.s32.totalorder %s9, 3
    %p151 = pnand %p149, %p150
    %p152 = pneg %p151
    // Predicated region
    $region29: #{base_model_embed.1} parent=5 // pred_check
      _
    $region30: #{base_model_embed.1} parent=5 // pred_check_branch
      %154 = sbr.rel (%p151) target = $region32
    $region31: #{base_model_embed.1} parent=5 // pred_region
      %s155 = ssub.s32 %s9, 1
      %s156 = smul.u32 2, %s14
      %p157 = scmp.lt.s32.totalorder %s156, 3
      %s158 = scalar_select %p157, %s156, 3
      %s159 = smul.addr %s158, 8
      %s160 = scalar_lea.vmem %s0, %s159
      %p161 = pneg %p35
      %p162 = pneg %p32
      %s163 = smul.u32 8, %s14
      %p164 = scmp.lt.s32.totalorder %s163, 15
      %s165 = scalar_select %p164, %s163, 15
      %s166 = smul.addr %s165, 2
      %s167 = smul.addr %s166, 8
      %s168 = scalar_lea.vmem %s1, %s167
      %p169 = pneg %p61
      %p170 = pneg %p58
      %p171 = pneg %p82
      %p172 = pneg %p79
      %p173 = pneg %p108
      %p174 = pneg %p105
      %s175 = smul.u32 8, %s14
      %p176 = scmp.lt.s32.totalorder %s175, 15
      %s177 = scalar_select %p176, %s175, 15
      %s178 = smul.addr %s177, 2
      %s179 = smul.addr %s178, 8
      %s180 = scalar_lea.vmem %s3, %s179
      %s181 = smul.u32 2, %s14
      %p182 = scmp.lt.s32.totalorder %s181, 3
      %s183 = scalar_select %p182, %s181, 3
      %s184 = smul.addr %s183, 8
      %s185 = scalar_lea.vmem %s0, %s184
      %s186 = smul.u32 2, %s14
      %s187 = smul.u32 8, %s14
      %p188 = scmp.lt.s32.totalorder %s187, 15
      %s189 = scalar_select %p188, %s187, 15
      %s190 = smul.addr %s189, 2
      %s191 = smul.addr %s190, 8
      %s192 = scalar_lea.vmem %s1, %s191
      %s193 = smul.u32 8, %s14
      %s194 = smul.u32 8, %s14
      %p195 = scmp.lt.s32.totalorder %s194, 15
      %s196 = scalar_select %p195, %s194, 15
      %s197 = smul.addr %s196, 2
      %s198 = smul.addr %s197, 8
      %s199 = scalar_lea.vmem %s3, %s198
      %s200 = smul.u32 8, %s14
      %v201 = vld [vmem:[%s185] sm:$0xff]
      %v202 = vld [vmem:[%s185 + $0x8] sm:$0xff]
      %v203 = vunpack.c.0.s8 %v201
      %v204 = vunpack.c.1.s8 %v201
      %v205 = vunpack.c.2.s8 %v201
      %v206 = vunpack.c.3.s8 %v201
      %v207 = vunpack.c.0.s8 %v202
      %v208 = vunpack.c.1.s8 %v202
      %v209 = vunpack.c.2.s8 %v202
      %v210 = vunpack.c.3.s8 %v202
      %s211 = scalar_lea.vmem %s2, 2
      %v212 = vld [vmem:[%s211] ss:$4 sm:$0x3]
      %vm213 = vcmp.eq.s32.totalorder %v203, 1
      %vm214 = vcmp.eq.s32.totalorder %v204, 1
      %vm215 = vcmp.eq.s32.totalorder %v205, 1
      %vm216 = vcmp.eq.s32.totalorder %v206, 1
      %vm217 = vcmp.eq.s32.totalorder %v207, 1
      %vm218 = vcmp.eq.s32.totalorder %v208, 1
      %vm219 = vcmp.eq.s32.totalorder %v209, 1
      %vm220 = vcmp.eq.s32.totalorder %v210, 1
      %s221 = scalar_lea.vmem %s2, 1
      %v222 = vld [vmem:[%s221] ss:$4 sm:$0x3]
      %v223 = vsel %vm213, 1, 0
      %v224 = vsel %vm214, 1, 0
      %v225 = vsel %vm215, 1, 0
      %v226 = vsel %vm216, 1, 0
      %v227 = vsel %vm217, 1, 0
      %v228 = vsel %vm218, 1, 0
      %v229 = vsel %vm219, 1, 0
      %v230 = vsel %vm220, 1, 0
      %231 = vset.pattern.permute.xlu0 0
      %232 = vperm.xlu0 %231, %v223
      %v233 = vpop.permute.xlu0 %232
      %234 = vset.pattern.permute.xlu0 0
      %235 = vperm.xlu0 %234, %v224
      %v236 = vpop.permute.xlu0 %235
      %237 = vset.pattern.permute.xlu0 0
      %238 = vperm.xlu0 %237, %v225
      %v239 = vpop.permute.xlu0 %238
      %240 = vset.pattern.permute.xlu0 0
      %241 = vperm.xlu0 %240, %v226
      %v242 = vpop.permute.xlu0 %241
      %243 = vset.pattern.permute.xlu0 0
      %244 = vperm.xlu0 %243, %v227
      %v245 = vpop.permute.xlu0 %244
      %246 = vset.pattern.permute.xlu0 0
      %247 = vperm.xlu0 %246, %v228
      %v248 = vpop.permute.xlu0 %247
      %249 = vset.pattern.permute.xlu0 0
      %250 = vperm.xlu0 %249, %v229
      %v251 = vpop.permute.xlu0 %250
      %252 = vset.pattern.permute.xlu0 0
      %253 = vperm.xlu0 %252, %v230
      %v254 = vpop.permute.xlu0 %253
      %vm255 = vcmp.eq.s32.totalorder %v233, 1
      %vm256 = vcmp.eq.s32.totalorder %v236, 1
      %vm257 = vcmp.eq.s32.totalorder %v239, 1
      %vm258 = vcmp.eq.s32.totalorder %v242, 1
      %vm259 = vcmp.eq.s32.totalorder %v245, 1
      %vm260 = vcmp.eq.s32.totalorder %v248, 1
      %vm261 = vcmp.eq.s32.totalorder %v251, 1
      %vm262 = vcmp.eq.s32.totalorder %v254, 1
      %v264 = vperm.slane %v222, 0
      %v265 = vperm.slane %v222, 1
      %v269 = vperm.slane %v212, 0
      %v270 = vperm.slane %v212, 1
      %v273 = vsel %vm255, %v264, %v269
      %v274 = vsel %vm255, %v265, %v270
      %v275 = vsel %vm256, %v264, %v269
      %v276 = vsel %vm256, %v265, %v270
      %v277 = vsel %vm257, %v264, %v269
      %v278 = vsel %vm257, %v265, %v270
      %v279 = vsel %vm258, %v264, %v269
      %v280 = vsel %vm258, %v265, %v270
      %v281 = vsel %vm259, %v264, %v269
      %v282 = vsel %vm259, %v265, %v270
      %v283 = vsel %vm260, %v264, %v269
      %v284 = vsel %vm260, %v265, %v270
      %v285 = vsel %vm261, %v264, %v269
      %v286 = vsel %vm261, %v265, %v270
      %v287 = vsel %vm262, %v264, %v269
      %v288 = vsel %vm262, %v265, %v270
      %vm289 = vcmp.eq.s32.totalorder %v203, 0
      %vm290 = vcmp.eq.s32.totalorder %v204, 0
      %vm291 = vcmp.eq.s32.totalorder %v205, 0
      %vm292 = vcmp.eq.s32.totalorder %v206, 0
      %vm293 = vcmp.eq.s32.totalorder %v207, 0
      %vm294 = vcmp.eq.s32.totalorder %v208, 0
      %vm295 = vcmp.eq.s32.totalorder %v209, 0
      %vm296 = vcmp.eq.s32.totalorder %v210, 0
      %v297 = vld [vmem:[%s2] ss:$4 sm:$0x3]
      %v298 = vsel %vm289, 1, 0
      %v299 = vsel %vm290, 1, 0
      %v300 = vsel %vm291, 1, 0
      %v301 = vsel %vm292, 1, 0
      %v302 = vsel %vm293, 1, 0
      %v303 = vsel %vm294, 1, 0
      %v304 = vsel %vm295, 1, 0
      %v305 = vsel %vm296, 1, 0
      %306 = vset.pattern.permute.xlu0 0
      %307 = vperm.xlu0 %306, %v298
      %v308 = vpop.permute.xlu0 %307
      %309 = vset.pattern.permute.xlu0 0
      %310 = vperm.xlu0 %309, %v299
      %v311 = vpop.permute.xlu0 %310
      %312 = vset.pattern.permute.xlu0 0
      %313 = vperm.xlu0 %312, %v300
      %v314 = vpop.permute.xlu0 %313
      %315 = vset.pattern.permute.xlu0 0
      %316 = vperm.xlu0 %315, %v301
      %v317 = vpop.permute.xlu0 %316
      %318 = vset.pattern.permute.xlu0 0
      %319 = vperm.xlu0 %318, %v302
      %v320 = vpop.permute.xlu0 %319
      %321 = vset.pattern.permute.xlu0 0
      %322 = vperm.xlu0 %321, %v303
      %v323 = vpop.permute.xlu0 %322
      %324 = vset.pattern.permute.xlu0 0
      %325 = vperm.xlu0 %324, %v304
      %v326 = vpop.permute.xlu0 %325
      %327 = vset.pattern.permute.xlu0 0
      %328 = vperm.xlu0 %327, %v305
      %v329 = vpop.permute.xlu0 %328
      %vm330 = vcmp.eq.s32.totalorder %v308, 1
      %vm331 = vcmp.eq.s32.totalorder %v311, 1
      %vm332 = vcmp.eq.s32.totalorder %v314, 1
      %vm333 = vcmp.eq.s32.totalorder %v317, 1
      %vm334 = vcmp.eq.s32.totalorder %v320, 1
      %vm335 = vcmp.eq.s32.totalorder %v323, 1
      %vm336 = vcmp.eq.s32.totalorder %v326, 1
      %vm337 = vcmp.eq.s32.totalorder %v329, 1
      %v339 = vperm.slane %v297, 0
      %v340 = vperm.slane %v297, 1
      %v343 = vsel %vm330, %v339, %v273
      %v344 = vsel %vm330, %v340, %v274
      %v345 = vsel %vm331, %v339, %v275
      %v346 = vsel %vm331, %v340, %v276
      %v347 = vsel %vm332, %v339, %v277
      %v348 = vsel %vm332, %v340, %v278
      %v349 = vsel %vm333, %v339, %v279
      %v350 = vsel %vm333, %v340, %v280
      %v351 = vsel %vm334, %v339, %v281
      %v352 = vsel %vm334, %v340, %v282
      %v353 = vsel %vm335, %v339, %v283
      %v354 = vsel %vm335, %v340, %v284
      %v355 = vsel %vm336, %v339, %v285
      %v356 = vsel %vm336, %v340, %v286
      %v357 = vsel %vm337, %v339, %v287
      %v358 = vsel %vm337, %v340, %v288
      %vm359 = vcmp.lt.s32.totalorder %v203, 3
      %vm360 = vcmp.lt.s32.totalorder %v204, 3
      %vm361 = vcmp.lt.s32.totalorder %v205, 3
      %vm362 = vcmp.lt.s32.totalorder %v206, 3
      %vm363 = vcmp.lt.s32.totalorder %v207, 3
      %vm364 = vcmp.lt.s32.totalorder %v208, 3
      %vm365 = vcmp.lt.s32.totalorder %v209, 3
      %vm366 = vcmp.lt.s32.totalorder %v210, 3
      %v367 = vld [vmem:[%s192] sm:$0xff]
      %v368 = vld [vmem:[%s192 + $0x8] sm:$0xff]
      %v369 = vld [vmem:[%s192 + $0x10] sm:$0xff]
      %v370 = vld [vmem:[%s192 + $0x18] sm:$0xff]
      %v371 = vld [vmem:[%s192 + $0x20] sm:$0xff]
      %v372 = vld [vmem:[%s192 + $0x28] sm:$0xff]
      %v373 = vld [vmem:[%s192 + $0x30] sm:$0xff]
      %v374 = vld [vmem:[%s192 + $0x38] sm:$0xff]
      %v375 = vld [vmem:[%s192 + $0x40] sm:$0xff]
      %v376 = vld [vmem:[%s192 + $0x48] sm:$0xff]
      %v377 = vld [vmem:[%s192 + $0x50] sm:$0xff]
      %v378 = vld [vmem:[%s192 + $0x58] sm:$0xff]
      %v379 = vld [vmem:[%s192 + $0x60] sm:$0xff]
      %v380 = vld [vmem:[%s192 + $0x68] sm:$0xff]
      %v381 = vld [vmem:[%s192 + $0x70] sm:$0xff]
      %v382 = vld [vmem:[%s192 + $0x78] sm:$0xff]
      %v383 = vadd.f32 %v367, %v343
      %v384 = vadd.f32 %v368, %v344
      %v385 = vadd.f32 %v369, %v345
      %v386 = vadd.f32 %v370, %v346
      %v387 = vadd.f32 %v371, %v347
      %v388 = vadd.f32 %v372, %v348
      %v389 = vadd.f32 %v373, %v349
      %v390 = vadd.f32 %v374, %v350
      %v391 = vadd.f32 %v375, %v351
      %v392 = vadd.f32 %v376, %v352
      %v393 = vadd.f32 %v377, %v353
      %v394 = vadd.f32 %v378, %v354
      %v395 = vadd.f32 %v379, %v355
      %v396 = vadd.f32 %v380, %v356
      %v397 = vadd.f32 %v381, %v357
      %v398 = vadd.f32 %v382, %v358
      %v399 = vsel %vm359, 1, 0
      %v400 = vsel %vm360, 1, 0
      %v401 = vsel %vm361, 1, 0
      %v402 = vsel %vm362, 1, 0
      %v403 = vsel %vm363, 1, 0
      %v404 = vsel %vm364, 1, 0
      %v405 = vsel %vm365, 1, 0
      %v406 = vsel %vm366, 1, 0
      %407 = vset.pattern.permute.xlu0 0
      %408 = vperm.xlu0 %407, %v399
      %v409 = vpop.permute.xlu0 %408
      %410 = vset.pattern.permute.xlu0 0
      %411 = vperm.xlu0 %410, %v400
      %v412 = vpop.permute.xlu0 %411
      %413 = vset.pattern.permute.xlu0 0
      %414 = vperm.xlu0 %413, %v401
      %v415 = vpop.permute.xlu0 %414
      %416 = vset.pattern.permute.xlu0 0
      %417 = vperm.xlu0 %416, %v402
      %v418 = vpop.permute.xlu0 %417
      %419 = vset.pattern.permute.xlu0 0
      %420 = vperm.xlu0 %419, %v403
      %v421 = vpop.permute.xlu0 %420
      %422 = vset.pattern.permute.xlu0 0
      %423 = vperm.xlu0 %422, %v404
      %v424 = vpop.permute.xlu0 %423
      %425 = vset.pattern.permute.xlu0 0
      %426 = vperm.xlu0 %425, %v405
      %v427 = vpop.permute.xlu0 %426
      %428 = vset.pattern.permute.xlu0 0
      %429 = vperm.xlu0 %428, %v406
      %v430 = vpop.permute.xlu0 %429
      %vm431 = vcmp.eq.s32.totalorder %v409, 1
      %vm432 = vcmp.eq.s32.totalorder %v412, 1
      %vm433 = vcmp.eq.s32.totalorder %v415, 1
      %vm434 = vcmp.eq.s32.totalorder %v418, 1
      %vm435 = vcmp.eq.s32.totalorder %v421, 1
      %vm436 = vcmp.eq.s32.totalorder %v424, 1
      %vm437 = vcmp.eq.s32.totalorder %v427, 1
      %vm438 = vcmp.eq.s32.totalorder %v430, 1
      %v439 = vsel %vm431, %v383, 0.0
      %v440 = vsel %vm431, %v384, 0.0
      %v441 = vsel %vm432, %v385, 0.0
      %v442 = vsel %vm432, %v386, 0.0
      %v443 = vsel %vm433, %v387, 0.0
      %v444 = vsel %vm433, %v388, 0.0
      %v445 = vsel %vm434, %v389, 0.0
      %v446 = vsel %vm434, %v390, 0.0
      %v447 = vsel %vm435, %v391, 0.0
      %v448 = vsel %vm435, %v392, 0.0
      %v449 = vsel %vm436, %v393, 0.0
      %v450 = vsel %vm436, %v394, 0.0
      %v451 = vsel %vm437, %v395, 0.0
      %v452 = vsel %vm437, %v396, 0.0
      %v453 = vsel %vm438, %v397, 0.0
      %v454 = vsel %vm438, %v398, 0.0
      %455 = vst [vmem:[%s199] sm:$0xff] %v439
      %456 = vst [vmem:[%s199 + $0x8] sm:$0xff] %v440
      %457 = vst [vmem:[%s199 + $0x10] sm:$0xff] %v441
      %458 = vst [vmem:[%s199 + $0x18] sm:$0xff] %v442
      %459 = vst [vmem:[%s199 + $0x20] sm:$0xff] %v443
      %460 = vst [vmem:[%s199 + $0x28] sm:$0xff] %v444
      %461 = vst [vmem:[%s199 + $0x30] sm:$0xff] %v445
      %462 = vst [vmem:[%s199 + $0x38] sm:$0xff] %v446
      %463 = vst [vmem:[%s199 + $0x40] sm:$0xff] %v447
      %464 = vst [vmem:[%s199 + $0x48] sm:$0xff] %v448
      %465 = vst [vmem:[%s199 + $0x50] sm:$0xff] %v449
      %466 = vst [vmem:[%s199 + $0x58] sm:$0xff] %v450
      %467 = vst [vmem:[%s199 + $0x60] sm:$0xff] %v451
      %468 = vst [vmem:[%s199 + $0x68] sm:$0xff] %v452
      %469 = vst [vmem:[%s199 + $0x70] sm:$0xff] %v453
      %470 = vst [vmem:[%s199 + $0x78] sm:$0xff] %v454
      %s471 = smul.u32 8, %s14
      %p472 = scmp.lt.s32.totalorder %s471, 15
      %s473 = scalar_select %p472, %s471, 15
      %s474 = smul.addr %s473, 2
      %s475 = smul.addr %s474, 8
      %s476 = scalar_lea.vmem %s3, %s475
      // Predicated region
      $region33: #{base_model_embed.1} parent=31 // pred_check
        %p477 = pneg %p105
      $region34: #{base_model_embed.1} parent=31 // pred_check_branch
        %479 = sbr.rel (%p477) target = $region36
      $region35: #{base_model_embed.1} parent=31 // pred_region
        %s480 = smul.u32 8, %s14
      $region36: #{base_model_embed.1} parent=31 // pred_fallthru
        _
    $region32: #{base_model_embed.1} parent=5 // pred_fallthru
      _
    %p481 = scmp.le.s32.totalorder 2, %s9
    // Predicated region
    $region37: #{base_model_embed.1} parent=5 // pred_check
      %p482 = pneg %p481
    $region38: #{base_model_embed.1} parent=5 // pred_check_branch
      %484 = sbr.rel (%p482) target = $region40
    $region39: #{base_model_embed.1} parent=5 // pred_region
      %s485 = ssub.s32 %s9, 2
      // Predicated region
      $region41: #{base_model_embed.1} parent=39 // pred_check
        %p486 = pneg %p111
      $region42: #{base_model_embed.1} parent=39 // pred_check_branch
        %488 = sbr.rel (%p486) target = $region44
      $region43: #{base_model_embed.1} parent=39 // pred_region
        %s489 = smul.u32 8, %s15
        %p490 = scmp.lt.s32.totalorder %s489, 15
        %s491 = scalar_select %p490, %s489, 15
        %s492 = smul.addr %s491, 2
        %s493 = smul.addr %s492, 8
        %s494 = scalar_lea.vmem %s3, %s493
      $region44: #{base_model_embed.1} parent=39 // pred_fallthru
        _
    $region40: #{base_model_embed.1} parent=5 // pred_fallthru
      _
  $region6: #{base_model_embed.1} parent=0 // loop_footer
    %s13 = sadd.s32 1, %s9
  $region7: #{base_model_embed.1} parent=0 // loop_footer_branch
    %8 = sbr.rel target = $region3
  $region8: #{base_model_embed.1} parent=0 // loop_exit
    _

</llo_original>
